<compile_context>
chip_gen: v6e
topology: v6e:2x2x1
jax: 0.10.0
libtpu: 0.0.40
codegen_flags: <defaults>
</compile_context>

<pallas_src>
import jax
import jax.numpy as jnp
from jax.experimental import pallas as pl
from jax.experimental.pallas import tpu as pltpu


_VMEM_CEILING = 48 << 20   # stay well under v7x's 64 MiB physical VMEM
_FUSE_BUDGET = 44 << 20    # max estimated VMEM use for the fused fast path
_TILE_BUDGET = 4 << 20     # target bytes for one [C, l_tile] block (tiled path)


def _vmem_limit(need_bytes):
    return int(min(_VMEM_CEILING, max(32 << 20, need_bytes)))


def _weight_bytes(C, S, Cout):
    return 4 * (S * C + S + Cout * S + Cout)


# ---------------------------------------------------------- shared gate math --
def _gate_from_mean(s_col, w1_ref, b1_ref, w2_ref, b2_ref):
    """s_col: [C, 1] f32 per-channel time mean -> sigmoid gate [Cout, 1] f32.

    Column-vector orientation (w @ s_col) keeps every intermediate with the
    channel axis on sublanes, so no lane<->sublane relayouts are needed and the
    wrapper never materializes w.T.
    """
    w1 = w1_ref[...].astype(jnp.float32)            # [S, C]
    b1 = b1_ref[...].astype(jnp.float32)            # [S, 1]
    w2 = w2_ref[...].astype(jnp.float32)            # [Cout, S]
    b2 = b2_ref[...].astype(jnp.float32)            # [Cout, 1]
    z = jax.lax.dot_general(w1, s_col, (((1,), (0,)), ((), ())),
                            preferred_element_type=jnp.float32) + b1   # [S, 1]
    z = jnp.maximum(z, 0.0)
    g = jax.lax.dot_general(w2, z, (((1,), (0,)), ((), ())),
                            preferred_element_type=jnp.float32) + b2   # [Cout, 1]
    return jax.nn.sigmoid(g)                                            # f32


# ------------------------------------------------------------ fused fast path --
def _make_fused_kernel(L):
    inv_L = 1.0 / float(L)

    def kernel(x_ref, w1_ref, b1_ref, w2_ref, b2_ref, o_ref):
        x = x_ref[0]                                           # [C, L], input dtype
        xf = x.astype(jnp.float32)
        s_col = jnp.sum(xf, axis=-1, keepdims=True) * inv_L    # [C, 1] f32
        g = _gate_from_mean(s_col, w1_ref, b1_ref, w2_ref, b2_ref)   # [Cout, 1] f32
        # Gate stays f32; only the product is cast back to the output dtype.
        o_ref[...] = (xf * g).astype(o_ref.dtype)[None]        # [1, C, L]

    return kernel


def _se_block_fused(x, w1, b1c, w2, b2c):
    B, C, L = x.shape
    S = w1.shape[0]
    Cout = w2.shape[0]
    itemsize = jnp.dtype(x.dtype).itemsize
    w_bytes = _weight_bytes(C, S, Cout)
    need = 4 * C * L * itemsize + 2 * C * L * 4 + w_bytes + (2 << 20)

    return pl.pallas_call(
        _make_fused_kernel(L),
        out_shape=jax.ShapeDtypeStruct((B, Cout, L), x.dtype),
        grid=(B,),
        in_specs=[
            pl.BlockSpec((1, C, L), lambda b: (b, 0, 0)),
            pl.BlockSpec((S, C), lambda b: (0, 0)),
            pl.BlockSpec((S, 1), lambda b: (0, 0)),
            pl.BlockSpec((Cout, S), lambda b: (0, 0)),
            pl.BlockSpec((Cout, 1), lambda b: (0, 0)),
        ],
        out_specs=pl.BlockSpec((1, Cout, L), lambda b: (b, 0, 0)),
        compiler_params=pltpu.CompilerParams(
            dimension_semantics=("parallel",),
            vmem_limit_bytes=_vmem_limit(need),
        ),
        cost_estimate=pl.CostEstimate(
            flops=2 * B * C * L + 2 * B * (C * S + S * Cout),
            transcendentals=B * Cout,
            bytes_accessed=2 * B * C * L * itemsize + w_bytes,
        ),
    )(x, w1, b1c, w2, b2c)


# ------------------------------------------------ tiled fallback: squeeze+gate --
def _make_squeeze_gate_kernel(L, l_tile, needs_mask):
    inv_L = 1.0 / float(L)

    def kernel(x_ref, w1_ref, b1_ref, w2_ref, b2_ref, g_ref, acc_ref):
        l = pl.program_id(1)

        @pl.when(l == 0)
        def _():
            acc_ref[...] = jnp.zeros_like(acc_ref)

        x = x_ref[...]                      # [1, C, l_tile], input dtype
        acc = acc_ref[...]                  # [1, C, 128] f32
        # Lane-chunked VPU accumulation; the single cross-lane (XLU) reduce is
        # deferred to the final grid step below.
        for c0 in range(0, l_tile, 128):
            chunk = x[:, :, c0:c0 + 128].astype(jnp.float32)
            if needs_mask:
                lane = (jax.lax.broadcasted_iota(jnp.int32, chunk.shape, 2)
                        + l * l_tile + c0)
                chunk = jnp.where(lane < L, chunk, 0.0)
            acc = acc + chunk
        acc_ref[...] = acc

        @pl.when(l == pl.num_programs(1) - 1)
        def _():
            s_col = jnp.sum(acc_ref[0], axis=-1, keepdims=True) * inv_L   # [C, 1]
            g = _gate_from_mean(s_col, w1_ref, b1_ref, w2_ref, b2_ref)    # [Cout, 1]
            g_ref[...] = g[None]                                          # [1, Cout, 1]

    return kernel


# --------------------------------------------------- tiled fallback: excite ---
def _scale_kernel(g_ref, x_ref, o_ref):
    # g_ref: [1, Cout, 1] f32 (gate kept in f32 up to the multiply);
    # x_ref / o_ref: [1, C, l_tile] in the input dtype (lane-dense stores).
    o_ref[...] = (x_ref[...].astype(jnp.float32) * g_ref[...]).astype(o_ref.dtype)


def _choose_l_tile(L, C, itemsize):
    """Time tile: multiple of 128 lanes sized so one [C, tile] block is ~4 MiB
    (amortizes the ~0.35 us per-grid-step overhead even at v7x's 3.2 TB/s),
    capped so the unrolled per-tile chunk loop stays small."""
    lanes_per_budget = _TILE_BUDGET // max(1, C * itemsize)
    max_lanes = max(256, (lanes_per_budget // 128) * 128)
    max_lanes = min(max_lanes, 8192)
    full = pl.cdiv(L, 128) * 128
    return int(max(128, min(max_lanes, full)))


def _se_block_tiled(x, w1, b1c, w2, b2c, l_tile):
    B, C, L = x.shape
    S = w1.shape[0]
    Cout = w2.shape[0]
    itemsize = jnp.dtype(x.dtype).itemsize

    if l_tile is None:
        tl = _choose_l_tile(L, C, itemsize)
    else:
        tl = int(max(128, pl.cdiv(int(l_tile), 128) * 128))
    n_l = pl.cdiv(L, tl)
    blk_in = C * tl * itemsize
    blk_f32 = C * tl * 4
    w_bytes = _weight_bytes(C, S, Cout)

    # ---- stage 1: L-tiled mean reduction, gate FCs folded into the last step.
    g = pl.pallas_call(
        _make_squeeze_gate_kernel(L, tl, needs_mask=(L % tl != 0)),
        out_shape=jax.ShapeDtypeStruct((B, Cout, 1), jnp.float32),
        grid=(B, n_l),
        in_specs=[
            pl.BlockSpec((1, C, tl), lambda b, l: (b, 0, l)),
            pl.BlockSpec((S, C), lambda b, l: (0, 0)),
            pl.BlockSpec((S, 1), lambda b, l: (0, 0)),
            pl.BlockSpec((Cout, S), lambda b, l: (0, 0)),
            pl.BlockSpec((Cout, 1), lambda b, l: (0, 0)),
        ],
        out_specs=pl.BlockSpec((1, Cout, 1), lambda b, l: (b, 0, 0)),
        scratch_shapes=[pltpu.VMEM((1, C, 128), jnp.float32)],
        compiler_params=pltpu.CompilerParams(
            dimension_semantics=("parallel", "arbitrary"),
            vmem_limit_bytes=_vmem_limit(
                2 * blk_in + 4 * C * 128 * 4 + w_bytes + (2 << 20)),
        ),
        cost_estimate=pl.CostEstimate(
            flops=B * C * L + 2 * B * (C * S + S * Cout),
            transcendentals=B * Cout,
            bytes_accessed=B * C * L * itemsize + w_bytes + B * Cout * 4,
        ),
    )(x, w1, b1c, w2, b2c)

    # ---- stage 2: excitation scale, lane-dense L tiles, both axes parallel.
    return pl.pallas_call(
        _scale_kernel,
        out_shape=jax.ShapeDtypeStruct((B, Cout, L), x.dtype),
        grid=(B, n_l),
        in_specs=[
            pl.BlockSpec((1, Cout, 1), lambda b, l: (b, 0, 0)),
            pl.BlockSpec((1, C, tl), lambda b, l: (b, 0, l)),
        ],
        out_specs=pl.BlockSpec((1, Cout, tl), lambda b, l: (b, 0, l)),
        compiler_params=pltpu.CompilerParams(
            dimension_semantics=("parallel", "parallel"),
            vmem_limit_bytes=_vmem_limit(4 * blk_in + 2 * blk_f32 + (2 << 20)),
        ),
        cost_estimate=pl.CostEstimate(
            flops=B * C * L,
            transcendentals=0,
            bytes_accessed=2 * B * C * L * itemsize + B * Cout * 4,
        ),
    )(g, x)


# ------------------------------------------------------------------ wrapper ---
def se_block(x, w1, b1, w2, b2, *, l_tile=None):
    """x: [B, C, L]; w1: [S, C]; b1: [S]; w2: [Cout, S]; b2: [Cout]; Cout == C.
    Returns sigmoid(w2 @ relu(w1 @ mean_t(x) + b1) + b2) * x  (lengths=None path).
    `l_tile` (optional) forces the tiled fallback path with that time tile."""
    B, C, L = x.shape
    S = w1.shape[0]
    Cout = w2.shape[0]
    assert w1.shape == (S, C)
    assert b1.shape == (S,)
    assert w2.shape == (Cout, S)
    assert b2.shape == (Cout,)
    assert Cout == C, "SEBlock gating requires out_channels == in_channels"

    # Column-vector biases (channel axis on sublanes) so kernels never relayout.
    b1c = b1.reshape(S, 1)
    b2c = b2.reshape(Cout, 1)

    itemsize = jnp.dtype(x.dtype).itemsize
    fused_need = (4 * C * L * itemsize + 2 * C * L * 4
                  + _weight_bytes(C, S, Cout) + (2 << 20))
    if l_tile is None and fused_need <= _FUSE_BUDGET:
        return _se_block_fused(x, w1, b1c, w2, b2c)
    return _se_block_tiled(x, w1, b1c, w2, b2c, l_tile)


def se_block_reference(x, w1, b1, w2, b2):
    """Pure-JAX reference matching the PyTorch forward (lengths=None)."""
    xf = x.astype(jnp.float32)
    s = jnp.mean(xf, axis=2, keepdims=True)                               # [B, C, 1]
    z = jnp.einsum('sc,bcl->bsl', w1.astype(jnp.float32), s)
    z = jax.nn.relu(z + b1.astype(jnp.float32)[None, :, None])            # [B, S, 1]
    g = jnp.einsum('os,bsl->bol', w2.astype(jnp.float32), z)
    g = jax.nn.sigmoid(g + b2.astype(jnp.float32)[None, :, None])         # [B, C, 1]
    return (g * xf).astype(x.dtype)


if __name__ == "__main__":
    # Small shapes consistent with the module: batch=2, in_channels=16,
    # se_channels=8, out_channels=16.
    B, C, S = 2, 16, 8
    key = jax.random.PRNGKey(0)
    kx, k1, k2, k3, k4, kx2, kx3 = jax.random.split(key, 7)

    # Conv1d(kernel_size=1) weights: PyTorch [out, in, 1] -> squeezed to [out, in].
    w1 = 0.1 * jax.random.normal(k1, (S, C), dtype=jnp.float32)
    b1 = 0.1 * jax.random.normal(k2, (S,), dtype=jnp.float32)
    w2 = 0.1 * jax.random.normal(k3, (C, S), dtype=jnp.float32)
    b2 = 0.1 * jax.random.normal(k4, (C,), dtype=jnp.float32)

    # 1) fused fast path (whole per-batch [C, L] slab resident in VMEM).
    L1 = 32
    x1 = jax.random.normal(kx, (B, C, L1), dtype=jnp.float32)
    out1 = jax.block_until_ready(se_block(x1, w1, b1, w2, b2))
    ref1 = se_block_reference(x1, w1, b1, w2, b2)
    assert out1.shape == (B, C, L1)
    assert jnp.allclose(out1, ref1, atol=1e-4, rtol=1e-4), "mismatch (fused path)"

    # 2) tiled fallback with a ragged tail (L % tile != 0 -> masked mean).
    L2 = 200
    x2 = jax.random.normal(kx2, (B, C, L2), dtype=jnp.float32)
    out2 = jax.block_until_ready(se_block(x2, w1, b1, w2, b2, l_tile=128))
    ref2 = se_block_reference(x2, w1, b1, w2, b2)
    assert out2.shape == (B, C, L2)
    assert jnp.allclose(out2, ref2, atol=1e-4, rtol=1e-4), "mismatch (tiled, masked tail)"

    # 3) tiled fallback, exact multiple, multi-chunk per-tile accumulation.
    L3 = 512
    x3 = jax.random.normal(kx3, (B, C, L3), dtype=jnp.float32)
    out3 = jax.block_until_ready(se_block(x3, w1, b1, w2, b2, l_tile=256))
    ref3 = se_block_reference(x3, w1, b1, w2, b2)
    assert out3.shape == (B, C, L3)
    assert jnp.allclose(out3, ref3, atol=1e-4, rtol=1e-4), "mismatch (tiled, multi-chunk)"

    print("KERNEL_OK")
</pallas_src>

<mosaic_0001>
module attributes {stable_mosaic.version = 11 : i64} {
  func.func @kernel(%arg0: i32, %arg1: memref<1x16x32xf32, #tpu.memory_space<vmem>>, %arg2: memref<8x16xf32, #tpu.memory_space<vmem>>, %arg3: memref<8x1xf32, #tpu.memory_space<vmem>>, %arg4: memref<16x8xf32, #tpu.memory_space<vmem>>, %arg5: memref<16x1xf32, #tpu.memory_space<vmem>>, %arg6: memref<1x16x32xf32, #tpu.memory_space<vmem>>) attributes {dimension_semantics = [#tpu.dimension_semantics<parallel>], iteration_bounds = array<i64: 2>, scalar_prefetch = 0 : i64, scratch_operands = 0 : i64, tpu.core_type = #tpu.core_type<tc>, window_params = [{transform_indices = @transform_0, window_bounds = array<i64: 1, 16, 32>}, {pipeline_mode = #tpu.pipeline_mode<synchronous>, transform_indices = @transform_1, window_bounds = array<i64: 8, 16>}, {pipeline_mode = #tpu.pipeline_mode<synchronous>, transform_indices = @transform_2, window_bounds = array<i64: 8, 1>}, {pipeline_mode = #tpu.pipeline_mode<synchronous>, transform_indices = @transform_3, window_bounds = array<i64: 16, 8>}, {pipeline_mode = #tpu.pipeline_mode<synchronous>, transform_indices = @transform_4, window_bounds = array<i64: 16, 1>}, {transform_indices = @transform_5, window_bounds = array<i64: 1, 16, 32>}]} {
    %c0 = arith.constant 0 : index
    %c0_0 = arith.constant 0 : index
    %c0_1 = arith.constant 0 : index
    %0 = vector.load %arg1[%c0, %c0_0, %c0_1] : memref<1x16x32xf32, #tpu.memory_space<vmem>>, vector<1x16x32xf32>
    %1 = vector.shape_cast %0 : vector<1x16x32xf32> to vector<16x32xf32>
    %cst = arith.constant dense<0.000000e+00> : vector<16xf32>
    %2 = vector.multi_reduction <add>, %1, %cst [1] : vector<16x32xf32> to vector<16xf32>
    %3 = vector.shape_cast %2 : vector<16xf32> to vector<16x1xf32>
    %cst_2 = arith.constant 3.125000e-02 : f32
    %4 = vector.broadcast %cst_2 : f32 to vector<16x1xf32>
    %5 = arith.mulf %3, %4 : vector<16x1xf32>
    %c0_3 = arith.constant 0 : index
    %c0_4 = arith.constant 0 : index
    %6 = vector.load %arg2[%c0_3, %c0_4] : memref<8x16xf32, #tpu.memory_space<vmem>>, vector<8x16xf32>
    %c0_5 = arith.constant 0 : index
    %c0_6 = arith.constant 0 : index
    %7 = vector.load %arg3[%c0_5, %c0_6] : memref<8x1xf32, #tpu.memory_space<vmem>>, vector<8x1xf32>
    %c0_7 = arith.constant 0 : index
    %c0_8 = arith.constant 0 : index
    %8 = vector.load %arg4[%c0_7, %c0_8] : memref<16x8xf32, #tpu.memory_space<vmem>>, vector<16x8xf32>
    %c0_9 = arith.constant 0 : index
    %c0_10 = arith.constant 0 : index
    %9 = vector.load %arg5[%c0_9, %c0_10] : memref<16x1xf32, #tpu.memory_space<vmem>>, vector<16x1xf32>
    %cst_11 = arith.constant dense<0.000000e+00> : vector<8x1xf32>
    %10 = tpu.matmul %6, %5, %cst_11 {dimension_numbers = #tpu.dot_dimension_numbers<[1], [0], [0], [1], [0, 0, 1, 1], [], []>} : vector<8x16xf32>, vector<16x1xf32>, vector<8x1xf32> -> vector<8x1xf32>
    %11 = arith.addf %10, %7 : vector<8x1xf32>
    %cst_12 = arith.constant 0.000000e+00 : f32
    %12 = vector.broadcast %cst_12 : f32 to vector<8x1xf32>
    %13 = arith.maximumf %11, %12 : vector<8x1xf32>
    %cst_13 = arith.constant dense<0.000000e+00> : vector<16x1xf32>
    %14 = tpu.matmul %8, %13, %cst_13 {dimension_numbers = #tpu.dot_dimension_numbers<[1], [0], [0], [1], [0, 0, 1, 1], [], []>} : vector<16x8xf32>, vector<8x1xf32>, vector<16x1xf32> -> vector<16x1xf32>
    %15 = arith.addf %14, %9 : vector<16x1xf32>
    %16 = arith.negf %15 : vector<16x1xf32>
    %17 = math.exp %16 : vector<16x1xf32>
    %cst_14 = arith.constant 1.000000e+00 : f32
    %18 = vector.broadcast %cst_14 : f32 to vector<16x1xf32>
    %19 = arith.addf %18, %17 : vector<16x1xf32>
    %20 = arith.divf %18, %19 : vector<16x1xf32>
    %21 = vector.broadcast %20 : vector<16x1xf32> to vector<16x32xf32>
    %22 = arith.mulf %1, %21 : vector<16x32xf32>
    %23 = vector.shape_cast %22 : vector<16x32xf32> to vector<1x16x32xf32>
    %c0_15 = arith.constant 0 : index
    %c0_16 = arith.constant 0 : index
    %c0_17 = arith.constant 0 : index
    %24 = vector.load %arg6[%c0_15, %c0_16, %c0_17] : memref<1x16x32xf32, #tpu.memory_space<vmem>>, vector<1x16x32xf32>
    tpu.vector_store %arg6[%c0_15, %c0_16, %c0_17], %23 {strides = array<i32>} : memref<1x16x32xf32, #tpu.memory_space<vmem>>, vector<1x16x32xf32>,
    return
  }
  func.func @transform_0(%arg0: i32) -> (i32, i32, i32) {
    %c0_i32 = arith.constant 0 : i32
    %c0_i32_0 = arith.constant 0 : i32
    %c0_i32_1 = arith.constant 0 : i32
    return %arg0, %c0_i32, %c0_i32_0 : i32, i32, i32
  }
  func.func @transform_1(%arg0: i32) -> (i32, i32) {
    %c0_i32 = arith.constant 0 : i32
    %c0_i32_0 = arith.constant 0 : i32
    %c0_i32_1 = arith.constant 0 : i32
    return %c0_i32, %c0_i32_0 : i32, i32
  }
  func.func @transform_2(%arg0: i32) -> (i32, i32) {
    %c0_i32 = arith.constant 0 : i32
    %c0_i32_0 = arith.constant 0 : i32
    %c0_i32_1 = arith.constant 0 : i32
    return %c0_i32, %c0_i32_0 : i32, i32
  }
  func.func @transform_3(%arg0: i32) -> (i32, i32) {
    %c0_i32 = arith.constant 0 : i32
    %c0_i32_0 = arith.constant 0 : i32
    %c0_i32_1 = arith.constant 0 : i32
    return %c0_i32, %c0_i32_0 : i32, i32
  }
  func.func @transform_4(%arg0: i32) -> (i32, i32) {
    %c0_i32 = arith.constant 0 : i32
    %c0_i32_0 = arith.constant 0 : i32
    %c0_i32_1 = arith.constant 0 : i32
    return %c0_i32, %c0_i32_0 : i32, i32
  }
  func.func @transform_5(%arg0: i32) -> (i32, i32, i32) {
    %c0_i32 = arith.constant 0 : i32
    %c0_i32_0 = arith.constant 0 : i32
    %c0_i32_1 = arith.constant 0 : i32
    return %arg0, %c0_i32, %c0_i32_0 : i32, i32, i32
  }
}

</mosaic_0001>

<llo_original>
// kernel: tpu_custom_call.1
$region0: #{tpu_custom_call.1}
  #allocation0 [shape = 'u32[]', space=smem, size = 0x4, offset = 0x4, fixed_abs, tag = 'smem constant byte address 0x4 - core index']
  #allocation1 [shape = 'u32[144,128]{1,0:T(1,128)}', space=vmem, size = 0x12000, scoped, tag = 'internal scratch']
  %s0 = inlined_call_operand.vmem [shape: f32[2,16,32], index: 0, kind: input, shape index: {}]
  %s1 = inlined_call_operand.vmem [shape: f32[8,16], index: 1, kind: input, shape index: {}]
  %s2 = inlined_call_operand.vmem [shape: f32[8,1], index: 2, kind: input, shape index: {}]
  %s3 = inlined_call_operand.vmem [shape: f32[16,8], index: 3, kind: input, shape index: {}]
  %s4 = inlined_call_operand.vmem [shape: f32[16,1], index: 4, kind: input, shape index: {}]
  %s5 = inlined_call_operand.hbm [shape: f32[2,16,32], index: 5, kind: output, shape index: {}]
  %s6 = sld [smem:[#allocation0]]
  $region53: #{tpu_custom_call.1} parent=0
    _
  %s8 = ssub.s32 1, %s6
  %s9 = scalar_select 0, %s8, %s6
  $region1: #{tpu_custom_call.1} parent=0
    #allocation2 [shape = 'u8[16384]{0}', space=vmem, size = 0x4000, scoped, tag = 'output window, operand 0']
    #allocation3 [shape = 's32[2]{0}', space=sflag, size = 0x8, scoped, tag = 'scoped memory for tpu_custom_call.1']
    %10 = vsyncpa [#allocation3], 0
    %s11 = scalar_lea.sflag [#allocation3], 1
    %12 = vsyncpa %s11, 0
    loop: start=0, step=1, limit=4
    $region2: #{tpu_custom_call.1} parent=1 // loop_pre_header
      _
    $region3: #{tpu_custom_call.1} parent=1 // loop_header
      %s14 = sphi 0, %s18
      %p15 = scmp.ge.s32.totalorder %s14, 4
      %s24 = sphi 0, %s26
      %s27 = sphi 0, %s24
      %s28 = sphi 0, %s27
      %s44 = sphi 0, %s28
      %s48 = sphi 0, %s48
      %s50 = sphi 0, %s48
      %s51 = sphi 0, %s50
      %s65 = sphi 0, %s51
      %s69 = sphi 0, %s69
      %s71 = sphi 0, %s69
      %s72 = sphi 0, %s71
      %s86 = sphi 0, %s72
      %s90 = sphi 0, %s90
      %s92 = sphi 0, %s90
      %s93 = sphi 0, %s92
      %s107 = sphi 0, %s93
      %s111 = sphi 0, %s111
      %s113 = sphi 0, %s111
      %s114 = sphi 0, %s113
      %s128 = sphi 0, %s114
      %s134 = sphi 0, %s136
      %s137 = sphi 0, %s134
      %s138 = sphi 0, %s137
      %s154 = sphi 0, %s138
    $region4: #{tpu_custom_call.1} parent=1 // loop_header_branch
      %17 = sbr.rel (%p15) target = $region8
    $region5: #{tpu_custom_call.1} parent=1 // loop_body
      %s19 = ssub.s32 %s14, 1
      %s20 = ssub.s32 %s14, 2
      %s21 = sadd.s32 %s14, 1
      %s22 = ssub.s32 %s14, %s21
      %p23 = scmp.eq.s32.totalorder %s22, 0
      %s25 = sadd.s32 %s24, 1
      %s26 = scalar_select %p23, %s24, %s25
      %p29 = pneg %p23
      %p30 = scmp.eq.s32.totalorder %s14, 1
      %p31 = por %p29, %p30
      %p32 = scmp.ne.s32.totalorder %s24, %s27
      %p33 = scmp.eq.s32.totalorder %s14, 0
      %p34 = por %p32, %p33
      %p35 = scmp.ne.s32.totalorder %s24, %s27
      %p36 = scmp.eq.s32.totalorder %s19, 1
      %p37 = por %p35, %p36
      %p38 = scmp.ne.s32.totalorder %s27, %s28
      %p39 = scmp.eq.s32.totalorder %s19, 0
      %p40 = por %p38, %p39
      %p41 = scmp.ne.s32.totalorder %s27, %s28
      %p42 = scmp.eq.s32.totalorder %s20, 1
      %p43 = por %p41, %p42
      %p45 = scmp.ne.s32.totalorder %s28, %s44
      %p46 = scmp.eq.s32.totalorder %s20, 0
      %p47 = por %p45, %p46
      %s49 = sadd.s32 %s48, 1
      %p52 = scmp.eq.s32.totalorder %s14, 1
      %p53 = scmp.ne.s32.totalorder %s48, %s50
      %p54 = scmp.eq.s32.totalorder %s14, 0
      %p55 = por %p53, %p54
      %p56 = scmp.ne.s32.totalorder %s48, %s50
      %p57 = scmp.eq.s32.totalorder %s19, 1
      %p58 = por %p56, %p57
      %p59 = scmp.ne.s32.totalorder %s50, %s51
      %p60 = scmp.eq.s32.totalorder %s19, 0
      %p61 = por %p59, %p60
      %p62 = scmp.ne.s32.totalorder %s50, %s51
      %p63 = scmp.eq.s32.totalorder %s20, 1
      %p64 = por %p62, %p63
      %p66 = scmp.ne.s32.totalorder %s51, %s65
      %p67 = scmp.eq.s32.totalorder %s20, 0
      %p68 = por %p66, %p67
      %s70 = sadd.s32 %s69, 1
      %p73 = scmp.eq.s32.totalorder %s14, 1
      %p74 = scmp.ne.s32.totalorder %s69, %s71
      %p75 = scmp.eq.s32.totalorder %s14, 0
      %p76 = por %p74, %p75
      %p77 = scmp.ne.s32.totalorder %s69, %s71
      %p78 = scmp.eq.s32.totalorder %s19, 1
      %p79 = por %p77, %p78
      %p80 = scmp.ne.s32.totalorder %s71, %s72
      %p81 = scmp.eq.s32.totalorder %s19, 0
      %p82 = por %p80, %p81
      %p83 = scmp.ne.s32.totalorder %s71, %s72
      %p84 = scmp.eq.s32.totalorder %s20, 1
      %p85 = por %p83, %p84
      %p87 = scmp.ne.s32.totalorder %s72, %s86
      %p88 = scmp.eq.s32.totalorder %s20, 0
      %p89 = por %p87, %p88
      %s91 = sadd.s32 %s90, 1
      %p94 = scmp.eq.s32.totalorder %s14, 1
      %p95 = scmp.ne.s32.totalorder %s90, %s92
      %p96 = scmp.eq.s32.totalorder %s14, 0
      %p97 = por %p95, %p96
      %p98 = scmp.ne.s32.totalorder %s90, %s92
      %p99 = scmp.eq.s32.totalorder %s19, 1
      %p100 = por %p98, %p99
      %p101 = scmp.ne.s32.totalorder %s92, %s93
      %p102 = scmp.eq.s32.totalorder %s19, 0
      %p103 = por %p101, %p102
      %p104 = scmp.ne.s32.totalorder %s92, %s93
      %p105 = scmp.eq.s32.totalorder %s20, 1
      %p106 = por %p104, %p105
      %p108 = scmp.ne.s32.totalorder %s93, %s107
      %p109 = scmp.eq.s32.totalorder %s20, 0
      %p110 = por %p108, %p109
      %s112 = sadd.s32 %s111, 1
      %p115 = scmp.eq.s32.totalorder %s14, 1
      %p116 = scmp.ne.s32.totalorder %s111, %s113
      %p117 = scmp.eq.s32.totalorder %s14, 0
      %p118 = por %p116, %p117
      %p119 = scmp.ne.s32.totalorder %s111, %s113
      %p120 = scmp.eq.s32.totalorder %s19, 1
      %p121 = por %p119, %p120
      %p122 = scmp.ne.s32.totalorder %s113, %s114
      %p123 = scmp.eq.s32.totalorder %s19, 0
      %p124 = por %p122, %p123
      %p125 = scmp.ne.s32.totalorder %s113, %s114
      %p126 = scmp.eq.s32.totalorder %s20, 1
      %p127 = por %p125, %p126
      %p129 = scmp.ne.s32.totalorder %s114, %s128
      %p130 = scmp.eq.s32.totalorder %s20, 0
      %p131 = por %p129, %p130
      %s132 = ssub.s32 %s14, %s21
      %p133 = scmp.eq.s32.totalorder %s132, 0
      %s135 = sadd.s32 %s134, 1
      %s136 = scalar_select %p133, %s134, %s135
      %p139 = pneg %p133
      %p140 = scmp.eq.s32.totalorder %s14, 1
      %p141 = por %p139, %p140
      %p142 = scmp.ne.s32.totalorder %s134, %s137
      %p143 = scmp.eq.s32.totalorder %s14, 0
      %p144 = por %p142, %p143
      %p145 = scmp.ne.s32.totalorder %s134, %s137
      %p146 = scmp.eq.s32.totalorder %s19, 1
      %p147 = por %p145, %p146
      %p148 = scmp.ne.s32.totalorder %s137, %s138
      %p149 = scmp.eq.s32.totalorder %s19, 0
      %p150 = por %p148, %p149
      %p151 = scmp.ne.s32.totalorder %s137, %s138
      %p152 = scmp.eq.s32.totalorder %s20, 1
      %p153 = por %p151, %p152
      %p155 = scmp.ne.s32.totalorder %s138, %s154
      %p156 = scmp.eq.s32.totalorder %s20, 0
      %p157 = por %p155, %p156
      %p158 = scmp.le.s32.totalorder 1, %s14
      %p159 = scmp.lt.s32.totalorder %s14, 3
      %p160 = pnand %p158, %p159
      %p161 = pneg %p160
      // Predicated region
      $region9: #{tpu_custom_call.1} parent=5 // pred_check
        _
      $region10: #{tpu_custom_call.1} parent=5 // pred_check_branch
        %163 = sbr.rel (%p160) target = $region12
      $region11: #{tpu_custom_call.1} parent=5 // pred_region
        %s164 = ssub.s32 %s14, 1
        // Predicated region
        $region13: #{tpu_custom_call.1} parent=11 // pred_check
          %p165 = pneg %p61
        $region14: #{tpu_custom_call.1} parent=11 // pred_check_branch
          %167 = sbr.rel (%p165) target = $region16
        $region15: #{tpu_custom_call.1} parent=11 // pred_region
          _
        $region16: #{tpu_custom_call.1} parent=11 // pred_fallthru
          _
        // Predicated region
        $region17: #{tpu_custom_call.1} parent=11 // pred_check
          %p168 = pneg %p82
        $region18: #{tpu_custom_call.1} parent=11 // pred_check_branch
          %170 = sbr.rel (%p168) target = $region20
        $region19: #{tpu_custom_call.1} parent=11 // pred_region
          _
        $region20: #{tpu_custom_call.1} parent=11 // pred_fallthru
          _
        // Predicated region
        $region21: #{tpu_custom_call.1} parent=11 // pred_check
          %p171 = pneg %p103
        $region22: #{tpu_custom_call.1} parent=11 // pred_check_branch
          %173 = sbr.rel (%p171) target = $region24
        $region23: #{tpu_custom_call.1} parent=11 // pred_region
          _
        $region24: #{tpu_custom_call.1} parent=11 // pred_fallthru
          _
        // Predicated region
        $region25: #{tpu_custom_call.1} parent=11 // pred_check
          %p174 = pneg %p124
        $region26: #{tpu_custom_call.1} parent=11 // pred_check_branch
          %176 = sbr.rel (%p174) target = $region28
        $region27: #{tpu_custom_call.1} parent=11 // pred_region
          _
        $region28: #{tpu_custom_call.1} parent=11 // pred_fallthru
          _
      $region12: #{tpu_custom_call.1} parent=5 // pred_fallthru
        _
      %p177 = scmp.lt.s32.totalorder %s14, 2
      // Predicated region
      $region29: #{tpu_custom_call.1} parent=5 // pred_check
        %p178 = pneg %p177
      $region30: #{tpu_custom_call.1} parent=5 // pred_check_branch
        %180 = sbr.rel (%p178) target = $region32
      $region31: #{tpu_custom_call.1} parent=5 // pred_region
        // Predicated region
        $region33: #{tpu_custom_call.1} parent=31 // pred_check
          %p181 = pneg %p34
        $region34: #{tpu_custom_call.1} parent=31 // pred_check_branch
          %183 = sbr.rel (%p181) target = $region36
        $region35: #{tpu_custom_call.1} parent=31 // pred_region
          %p184 = scmp.lt.s32.totalorder %s14, 1
          %s185 = scalar_select %p184, %s14, 1
          %s186 = smul.addr %s185, 2
          %s187 = smul.addr %s186, 8
          %s188 = scalar_lea.vmem %s0, %s187
        $region36: #{tpu_custom_call.1} parent=31 // pred_fallthru
          _
      $region32: #{tpu_custom_call.1} parent=5 // pred_fallthru
        _
      %p189 = scmp.le.s32.totalorder 1, %s14
      %p190 = scmp.lt.s32.totalorder %s14, 3
      %p191 = pnand %p189, %p190
      %p192 = pneg %p191
      // Predicated region
      $region37: #{tpu_custom_call.1} parent=5 // pred_check
        _
      $region38: #{tpu_custom_call.1} parent=5 // pred_check_branch
        %194 = sbr.rel (%p191) target = $region40
      $region39: #{tpu_custom_call.1} parent=5 // pred_region
        %s195 = ssub.s32 %s14, 1
        %p196 = scmp.lt.s32.totalorder %s19, 1
        %s197 = scalar_select %p196, %s19, 1
        %s198 = smul.addr %s197, 2
        %s199 = smul.addr %s198, 8
        %s200 = scalar_lea.vmem %s0, %s199
        %p201 = pneg %p40
        %p202 = pneg %p37
        %p203 = pneg %p61
        %p204 = pneg %p58
        %p205 = pneg %p82
        %p206 = pneg %p79
        %p207 = pneg %p103
        %p208 = pneg %p100
        %p209 = pneg %p124
        %p210 = pneg %p121
        %p211 = pneg %p150
        %p212 = pneg %p147
        %s213 = sand.u32 %s137, 1
        %s214 = scalar_lea.sflag [#allocation3], %s213
        %s215 = sand.u32 %s137, 1
        %s216 = smul.addr %s215, 16
        %s217 = scalar_lea.vmem [#allocation2], %s216
        %p218 = scmp.lt.s32.totalorder %s19, 1
        %s219 = scalar_select %p218, %s19, 1
        %s220 = smul.addr %s219, 2
        %s221 = smul.addr %s220, 8
        %s222 = scalar_lea.vmem %s0, %s221
        %v223 = vld [vmem:[%s222] sm:$0xff]
        %v224 = vld [vmem:[%s222 + $0x8] sm:$0xff]
        %vm225 = vcmask 261120
        %v226 = vsel %vm225, %v223, 0.0
        %227 = vadd.xlane.f32.xlu0 %v226
        %v228 = vpop.xlane.xlu0 %227
        %v229 = vsel %vm225, %v224, 0.0
        %230 = vadd.xlane.f32.xlu0 %v229
        %v231 = vpop.xlane.xlu0 %230
        %v232 = vmul.f32 %v228, 0.03125
        %v233 = vmul.f32 %v231, 0.03125
        %v234 = vld [vmem:[%s1] sm:$0xff]
        %v235 = vld [vmem:[%s2] sm:$0xff]
        %v236 = vld [vmem:[%s3] sm:$0xff]
        %v237 = vld [vmem:[%s3 + $0x8] sm:$0xff]
        %v238 = vld [vmem:[%s4] sm:$0xff]
        %v239 = vld [vmem:[%s4 + $0x8] sm:$0xff]
        %vm240 = vcmask 130048
        %v242 = vsel %vm240, %v234, 0
        %244 = vmatprep.subr.mxu0 0.0
        %245 = vmatpush1.msra.mxu0 0.0
        %246 = vmatprep.subr.mxu0 0.0
        %247 = vmatpush1.msra.mxu0 0.0
        %248 = vmatprep.subr.mxu0 0.0
        %249 = vmatpush1.msra.mxu0 0.0
        %250 = vmatprep.subr.mxu0 0.0
        %251 = vmatpush1.msra.mxu0 0.0
        %252 = vmatprep.subr.mxu0 0.0
        %253 = vmatpush1.msra.mxu0 0.0
        %254 = vmatprep.subr.mxu0 0.0
        %255 = vmatpush1.msra.mxu0 0.0
        %256 = vmatprep.subr.mxu0 0.0
        %257 = vmatpush1.msra.mxu0 0.0
        %258 = vmatprep.subr.mxu0 0.0
        %259 = vmatpush1.msra.mxu0 0.0
        %260 = vmatprep.subr.mxu0 0.0
        %261 = vmatpush1.msra.mxu0 0.0
        %262 = vmatprep.subr.mxu0 0.0
        %263 = vmatpush1.msra.mxu0 0.0
        %264 = vmatprep.subr.mxu0 0.0
        %265 = vmatpush1.msra.mxu0 0.0
        %266 = vmatprep.subr.mxu0 0.0
        %267 = vmatpush1.msra.mxu0 0.0
        %268 = vmatprep.subr.mxu0 0.0
        %269 = vmatpush1.msra.mxu0 0.0
        %270 = vmatprep.subr.mxu0 0.0
        %271 = vmatpush1.msra.mxu0 0.0
        %272 = vmatprep.subr.mxu0 0.0
        %273 = vmatpush1.msra.mxu0 %v233
        %274 = vmatprep.subr.mxu0 0.0
        %275 = vmatpush1.msra.mxu0 %v232
        %276 = vmatprep.subr.mxu0 0.0
        %277 = vmatpush2.msra.mxu0 0.0
        %278 = vmatprep.subr.mxu0 0.0
        %279 = vmatpush2.msra.mxu0 0.0
        %280 = vmatprep.subr.mxu0 0.0
        %281 = vmatpush2.msra.mxu0 0.0
        %282 = vmatprep.subr.mxu0 0.0
        %283 = vmatpush2.msra.mxu0 0.0
        %284 = vmatprep.subr.mxu0 0.0
        %285 = vmatpush2.msra.mxu0 0.0
        %286 = vmatprep.subr.mxu0 0.0
        %287 = vmatpush2.msra.mxu0 0.0
        %288 = vmatprep.subr.mxu0 0.0
        %289 = vmatpush2.msra.mxu0 0.0
        %290 = vmatprep.subr.mxu0 0.0
        %291 = vmatpush2.msra.mxu0 0.0
        %292 = vmatprep.subr.mxu0 0.0
        %293 = vmatpush2.msra.mxu0 0.0
        %294 = vmatprep.subr.mxu0 0.0
        %295 = vmatpush2.msra.mxu0 0.0
        %296 = vmatprep.subr.mxu0 0.0
        %297 = vmatpush2.msra.mxu0 0.0
        %298 = vmatprep.subr.mxu0 0.0
        %299 = vmatpush2.msra.mxu0 0.0
        %300 = vmatprep.subr.mxu0 0.0
        %301 = vmatpush2.msra.mxu0 0.0
        %302 = vmatprep.subr.mxu0 0.0
        %303 = vmatpush2.msra.mxu0 0.0
        %304 = vmatprep.subr.mxu0 0.0
        %305 = vmatpush2.msra.mxu0 0.0
        %306 = vmatprep.subr.mxu0 0.0
        %307 = vmatpush2.msra.mxu0 0.0
        %308 = vmatprep.mubr.f32.mxu0 0.0
        %309 = vmatmul.mubr.f32.gmra.mxu0 %v242
        %v310 = vpop.f32.mrf.mxu0
        %v311 = vadd.f32 %v235, %v310
        %v312 = vpop.f32.mrf.mxu0
        %313 = vdwg.mxu0
        %v314 = vmax.f32 %v311, 0.0
        %vm315 = vcmask 64512
        %v317 = vsel %vm315, %v236, 0
        %v320 = vsel %vm315, %v237, 0
        %322 = vmatprep.subr.mxu0 0.0
        %323 = vmatpush1.msra.mxu0 0.0
        %324 = vmatprep.subr.mxu0 0.0
        %325 = vmatpush1.msra.mxu0 0.0
        %326 = vmatprep.subr.mxu0 0.0
        %327 = vmatpush1.msra.mxu0 0.0
        %328 = vmatprep.subr.mxu0 0.0
        %329 = vmatpush1.msra.mxu0 0.0
        %330 = vmatprep.subr.mxu0 0.0
        %331 = vmatpush1.msra.mxu0 0.0
        %332 = vmatprep.subr.mxu0 0.0
        %333 = vmatpush1.msra.mxu0 0.0
        %334 = vmatprep.subr.mxu0 0.0
        %335 = vmatpush1.msra.mxu0 0.0
        %336 = vmatprep.subr.mxu0 0.0
        %337 = vmatpush1.msra.mxu0 0.0
        %338 = vmatprep.subr.mxu0 0.0
        %339 = vmatpush1.msra.mxu0 0.0
        %340 = vmatprep.subr.mxu0 0.0
        %341 = vmatpush1.msra.mxu0 0.0
        %342 = vmatprep.subr.mxu0 0.0
        %343 = vmatpush1.msra.mxu0 0.0
        %344 = vmatprep.subr.mxu0 0.0
        %345 = vmatpush1.msra.mxu0 0.0
        %346 = vmatprep.subr.mxu0 0.0
        %347 = vmatpush1.msra.mxu0 0.0
        %348 = vmatprep.subr.mxu0 0.0
        %349 = vmatpush1.msra.mxu0 0.0
        %350 = vmatprep.subr.mxu0 0.0
        %351 = vmatpush1.msra.mxu0 0.0
        %352 = vmatprep.subr.mxu0 0.0
        %353 = vmatpush1.msra.mxu0 %v314
        %354 = vmatprep.subr.mxu0 0.0
        %355 = vmatpush2.msra.mxu0 0.0
        %356 = vmatprep.subr.mxu0 0.0
        %357 = vmatpush2.msra.mxu0 0.0
        %358 = vmatprep.subr.mxu0 0.0
        %359 = vmatpush2.msra.mxu0 0.0
        %360 = vmatprep.subr.mxu0 0.0
        %361 = vmatpush2.msra.mxu0 0.0
        %362 = vmatprep.subr.mxu0 0.0
        %363 = vmatpush2.msra.mxu0 0.0
        %364 = vmatprep.subr.mxu0 0.0
        %365 = vmatpush2.msra.mxu0 0.0
        %366 = vmatprep.subr.mxu0 0.0
        %367 = vmatpush2.msra.mxu0 0.0
        %368 = vmatprep.subr.mxu0 0.0
        %369 = vmatpush2.msra.mxu0 0.0
        %370 = vmatprep.subr.mxu0 0.0
        %371 = vmatpush2.msra.mxu0 0.0
        %372 = vmatprep.subr.mxu0 0.0
        %373 = vmatpush2.msra.mxu0 0.0
        %374 = vmatprep.subr.mxu0 0.0
        %375 = vmatpush2.msra.mxu0 0.0
        %376 = vmatprep.subr.mxu0 0.0
        %377 = vmatpush2.msra.mxu0 0.0
        %378 = vmatprep.subr.mxu0 0.0
        %379 = vmatpush2.msra.mxu0 0.0
        %380 = vmatprep.subr.mxu0 0.0
        %381 = vmatpush2.msra.mxu0 0.0
        %382 = vmatprep.subr.mxu0 0.0
        %383 = vmatpush2.msra.mxu0 0.0
        %384 = vmatprep.subr.mxu0 0.0
        %385 = vmatpush2.msra.mxu0 0.0
        %386 = vmatprep.mubr.f32.mxu0 0.0
        %387 = vmatmul.mubr.f32.gmra.mxu0 %v317
        %v388 = vpop.f32.mrf.mxu0
        %v389 = vadd.f32 %v238, %v388
        %v390 = vpop.f32.mrf.mxu0
        %391 = vmatprep.mubr.f32.mxu0 0.0
        %392 = vmatmul.mubr.f32.gmra.mxu0 %v320
        %v393 = vpop.f32.mrf.mxu0
        %v394 = vadd.f32 %v239, %v393
        %v395 = vpop.f32.mrf.mxu0
        %396 = vdwg.mxu0
        %v397 = vxor.u32 %v389, 2147483648
        %v398 = vxor.u32 %v394, 2147483648
        %v399 = vmul.f32 %v397, 1.442695
        %v400 = vpow.pop %v399
        %v401 = vmul.f32 %v398, 1.442695
        %v402 = vpow.pop %v401
        %v403 = vadd.f32 %v400, 1.0
        %v404 = vadd.f32 %v402, 1.0
        %v405 = vrcp.pop %v403
        %v406 = vmul.f32 1.0, %v405
        %v407 = vrcp.pop %v404
        %v408 = vmul.f32 1.0, %v407
        %410 = vset.pattern.permute.xlu0 0
        %411 = vperm.xlu0 %410, %v406
        %v412 = vpop.permute.xlu0 %411
        %415 = vset.pattern.permute.xlu0 0
        %416 = vperm.xlu0 %415, %v408
        %v417 = vpop.permute.xlu0 %416
        %v419 = vmul.f32 %v223, %v412
        %v420 = vmul.f32 %v224, %v417
        %421 = vst.msk [vmem:[%s217] sm:$0xff] %vm225, %v419
        %422 = vst.msk [vmem:[%s217 + $0x8] sm:$0xff] %vm225, %v420
        %s423 = sand.u32 %s137, 1
        %s424 = scalar_lea.sflag [#allocation3], %s423
        %s425 = sand.u32 %s137, 1
        %s426 = smul.addr %s425, 16
        %s427 = scalar_lea.vmem [#allocation2], %s426
        // Predicated region
        $region41: #{tpu_custom_call.1} parent=39 // pred_check
          %p428 = pneg %p147
        $region42: #{tpu_custom_call.1} parent=39 // pred_check_branch
          %430 = sbr.rel (%p428) target = $region44
        $region43: #{tpu_custom_call.1} parent=39 // pred_region
          %s432 = ssub.s32 256, 256
          %433 = vsyncadd %s424, %s432
          %s434 = smul.addr %s19, 2
          %s435 = smul.addr %s434, 128
          %s436 = scalar_lea.hbm %s5, %s435
          %s437 = sshll.u32 %s427, 4
          %s438 = int_to_ptr.vmem [resolvable:$true] %s437
          %443 = dma.vmem_to_hbm [thread:$0]  %s438, 256, %s436, %s424, 128, 128, 8
        $region44: #{tpu_custom_call.1} parent=39 // pred_fallthru
          _
      $region40: #{tpu_custom_call.1} parent=5 // pred_fallthru
        _
      %p444 = scmp.le.s32.totalorder 2, %s14
      // Predicated region
      $region45: #{tpu_custom_call.1} parent=5 // pred_check
        %p445 = pneg %p444
      $region46: #{tpu_custom_call.1} parent=5 // pred_check_branch
        %447 = sbr.rel (%p445) target = $region48
      $region47: #{tpu_custom_call.1} parent=5 // pred_region
        %s448 = ssub.s32 %s14, 2
        // Predicated region
        $region49: #{tpu_custom_call.1} parent=47 // pred_check
          %p449 = pneg %p153
        $region50: #{tpu_custom_call.1} parent=47 // pred_check_branch
          %451 = sbr.rel (%p449) target = $region52
        $region51: #{tpu_custom_call.1} parent=47 // pred_region
          %s452 = sand.u32 %s138, 1
          %s453 = scalar_lea.sflag [#allocation3], %s452
          %s454 = sand.u32 %s138, 1
          %s455 = smul.addr %s454, 16
          %s456 = scalar_lea.vmem [#allocation2], %s455
          %457 = dma.done %s453, 256
        $region52: #{tpu_custom_call.1} parent=47 // pred_fallthru
          _
      $region48: #{tpu_custom_call.1} parent=5 // pred_fallthru
        _
    $region6: #{tpu_custom_call.1} parent=1 // loop_footer
      %s18 = sadd.s32 1, %s14
    $region7: #{tpu_custom_call.1} parent=1 // loop_footer_branch
      %13 = sbr.rel target = $region3
    $region8: #{tpu_custom_call.1} parent=1 // loop_exit
      _
    %458 = vsyncpa [#allocation3], 1
    %s459 = scalar_lea.sflag [#allocation3], 1
    %460 = vsyncpa %s459, 1

</llo_original>
